<compile_context>
chip_gen: v7x
topology: tpu7x:2x2x1
jax: 0.10.0
libtpu: 0.0.40
codegen_flags: <defaults>
</compile_context>

<pallas_src>
import math

import jax
import jax.numpy as jnp
from jax import lax
from jax.experimental import pallas as pl
from jax.experimental.pallas import tpu as pltpu


def _attention_head_kernel(x_ref, w_ref, o_ref):
    # x_ref: (bb, T, C)  batch-block of the input (f32)
    # w_ref: (C, 3H)     fused [Wk | Wq * 1/sqrt(H) | Wv], bf16
    # o_ref: (bb, T, H)
    x = x_ref[...]
    w = w_ref[...]
    bb, T, C = x.shape
    H = w.shape[1] // 3

    # --- Fused QKV projection: one MXU pass, N = 3H output columns ---------
    x2 = x.reshape(bb * T, C).astype(jnp.bfloat16)
    qkv = jnp.dot(x2, w, preferred_element_type=jnp.float32)   # (bb*T, 3H) f32
    qkv = qkv.reshape(bb, T, 3 * H)
    k = qkv[:, :, 0 * H:1 * H]
    q = qkv[:, :, 1 * H:2 * H]   # 1/sqrt(H) already folded into Wq host-side
    v = qkv[:, :, 2 * H:3 * H]

    # --- scores = q @ k^T without materializing a transposed copy of k -----
    scores = lax.dot_general(
        q.astype(jnp.bfloat16), k.astype(jnp.bfloat16),
        dimension_numbers=(((2,), (2,)), ((0,), (0,))),
        preferred_element_type=jnp.float32)                    # (bb, T, T) f32

    # --- causal mask (tril): query i attends to keys j <= i -----------------
    # 2-D mask computed once, broadcast over the batch block.
    row = lax.broadcasted_iota(jnp.int32, (T, T), 0)
    col = lax.broadcasted_iota(jnp.int32, (T, T), 1)
    causal = (col <= row)[None, :, :]                          # (1, T, T)
    scores = jnp.where(causal, scores, -jnp.inf)

    # --- numerically stable softmax, kept in f32 (safe on v5e) --------------
    m = jnp.max(scores, axis=-1, keepdims=True)
    e = jnp.exp(scores - m)
    denom = jnp.sum(e, axis=-1, keepdims=True)
    attn = e * pl.reciprocal(denom, approx=True)               # EUP vrcp

    # TODO(synk): training-mode dropout on `attn` not implemented (eval mode).

    # --- out = attn @ v ------------------------------------------------------
    out = lax.dot_general(
        attn.astype(jnp.bfloat16), v.astype(jnp.bfloat16),
        dimension_numbers=(((2,), (1,)), ((0,), (0,))),
        preferred_element_type=jnp.float32)                    # (bb, T, H)
    o_ref[...] = out.astype(o_ref.dtype)


def self_attention_head(x, wk, wq, wv):
    """x: (B, T, C) float32; wk/wq/wv: (C, H). Returns (B, T, H).

    Matches SelfAttentionHead.forward in eval mode.
    """
    B, T, C = x.shape
    H = wk.shape[1]

    # Host-side fusion of the three projections; attention scale folded into q.
    # Cast once to bf16: MXU-native operand, halves the weight DMA and removes
    # the per-grid-step cast in the kernel.
    w_qkv = jnp.concatenate(
        [wk, wq * (1.0 / math.sqrt(H)), wv], axis=1).astype(jnp.bfloat16)  # (C, 3H)

    # Adaptive batch split:
    #  - tiny problems: one grid step for the whole batch (per-step overhead
    #    ~0.35us would dominate, and v5e/v6e have a single TensorCore anyway).
    #  - larger even batches: 2 "parallel" blocks so v7x megacore can shard
    #    across its 2 TensorCores.
    split_ok = (B % 2 == 0) and (B >= 2) and (B * T * C >= (1 << 14))
    n_blocks = 2 if split_ok else 1
    bb = B // n_blocks

    # TODO(synk): for large T, replace the monolithic (T, T) scores block with
    # flash-style KV tiling + online softmax; unnecessary at block_size=8.

    flops = 2 * B * (3 * T * C * H + 2 * T * T * H)
    bytes_accessed = 4 * (B * T * C + B * T * H) + 2 * (C * 3 * H)
    cost = pl.CostEstimate(flops=flops, transcendentals=B * T * T,
                           bytes_accessed=bytes_accessed)

    return pl.pallas_call(
        _attention_head_kernel,
        out_shape=jax.ShapeDtypeStruct((B, T, H), x.dtype),
        grid_spec=pltpu.PrefetchScalarGridSpec(
            num_scalar_prefetch=0,
            grid=(n_blocks,),
            in_specs=[
                pl.BlockSpec((bb, T, C), lambda b: (b, 0, 0)),
                pl.BlockSpec((C, 3 * H), lambda b: (0, 0)),
            ],
            out_specs=pl.BlockSpec((bb, T, H), lambda b: (b, 0, 0)),
        ),
        compiler_params=pltpu.CompilerParams(
            dimension_semantics=("parallel",)),
        cost_estimate=cost,
    )(x, w_qkv)


def reference(x, wk, wq, wv):
    """Pure-JAX f32 reference mirroring the PyTorch forward (eval mode)."""
    H = wk.shape[1]
    k = x @ wk
    q = x @ wq
    v = x @ wv
    scores = (q @ jnp.swapaxes(k, -2, -1)) / math.sqrt(H)
    T = x.shape[1]
    tril = jnp.tril(jnp.ones((T, T), dtype=bool))
    scores = jnp.where(tril, scores, -jnp.inf)
    attn = jax.nn.softmax(scores, axis=-1)
    return attn @ v


if __name__ == "__main__":
    # Shapes consistent with the module: emb_dim=32, head_size=16, block_size=8
    B, T, C, H = 2, 8, 32, 16
    key = jax.random.PRNGKey(0)
    kx, kk, kq, kv = jax.random.split(key, 4)

    x = jax.random.normal(kx, (B, T, C), dtype=jnp.float32)
    # Deterministic parameter init (shapes from nn.Linear(emb_dim, head_size)),
    # stored pre-transposed as (C, H).
    scale = 1.0 / math.sqrt(C)
    wk = jax.random.uniform(kk, (C, H), jnp.float32, -scale, scale)
    wq = jax.random.uniform(kq, (C, H), jnp.float32, -scale, scale)
    wv = jax.random.uniform(kv, (C, H), jnp.float32, -scale, scale)

    out = self_attention_head(x, wk, wq, wv)
    out = jax.block_until_ready(out)

    ref = reference(x, wk, wq, wv)
    assert out.shape == (B, T, H)
    # Tolerance loosened vs. the f32 reference: MXU operands are bf16 and the
    # softmax reciprocal is the EUP approx variant.
    assert jnp.allclose(out, ref, atol=5e-2, rtol=5e-2), "mismatch vs reference"

    print("KERNEL_OK")
</pallas_src>

<mosaic_0001>
module attributes {stable_mosaic.version = 11 : i64} {
  func.func @_attention_head_kernel(%arg0: i32, %arg1: memref<2x8x32xf32, #tpu.memory_space<vmem>>, %arg2: memref<32x48xbf16, #tpu.memory_space<vmem>>, %arg3: memref<2x8x16xf32, #tpu.memory_space<vmem>>) attributes {dimension_semantics = [#tpu.dimension_semantics<parallel>], iteration_bounds = array<i64: 1>, scalar_prefetch = 0 : i64, scratch_operands = 0 : i64, tpu.core_type = #tpu.core_type<tc>, window_params = [{transform_indices = @transform_0, window_bounds = array<i64: 2, 8, 32>}, {pipeline_mode = #tpu.pipeline_mode<synchronous>, transform_indices = @transform_1, window_bounds = array<i64: 32, 48>}, {transform_indices = @transform_2, window_bounds = array<i64: 2, 8, 16>}]} {
    %c0 = arith.constant 0 : index
    %c0_0 = arith.constant 0 : index
    %c0_1 = arith.constant 0 : index
    %0 = vector.load %arg1[%c0, %c0_0, %c0_1] : memref<2x8x32xf32, #tpu.memory_space<vmem>>, vector<2x8x32xf32>
    %c0_2 = arith.constant 0 : index
    %c0_3 = arith.constant 0 : index
    %1 = vector.load %arg2[%c0_2, %c0_3] : memref<32x48xbf16, #tpu.memory_space<vmem>>, vector<32x48xbf16>
    %2 = vector.shape_cast %0 : vector<2x8x32xf32> to vector<16x32xf32>
    %3 = arith.truncf %2 : vector<16x32xf32> to vector<16x32xbf16>
    %cst = arith.constant dense<0.000000e+00> : vector<16x48xf32>
    %4 = tpu.matmul %3, %1, %cst {dimension_numbers = #tpu.dot_dimension_numbers<[1], [0], [0], [1], [0, 0, 1, 1], [], []>} : vector<16x32xbf16>, vector<32x48xbf16>, vector<16x48xf32> -> vector<16x48xf32>
    %5 = vector.shape_cast %4 : vector<16x48xf32> to vector<2x8x48xf32>
    %6 = vector.extract_strided_slice %5 {offsets = [0, 0, 0], sizes = [2, 8, 16], strides = [1, 1, 1]} : vector<2x8x48xf32> to vector<2x8x16xf32>
    %7 = vector.extract_strided_slice %5 {offsets = [0, 0, 16], sizes = [2, 8, 16], strides = [1, 1, 1]} : vector<2x8x48xf32> to vector<2x8x16xf32>
    %8 = vector.extract_strided_slice %5 {offsets = [0, 0, 32], sizes = [2, 8, 16], strides = [1, 1, 1]} : vector<2x8x48xf32> to vector<2x8x16xf32>
    %9 = arith.truncf %7 : vector<2x8x16xf32> to vector<2x8x16xbf16>
    %10 = arith.truncf %6 : vector<2x8x16xf32> to vector<2x8x16xbf16>
    %cst_4 = arith.constant dense<0.000000e+00> : vector<2x8x8xf32>
    %11 = tpu.matmul %9, %10, %cst_4 {dimension_numbers = #tpu.dot_dimension_numbers<[2], [2], [1], [1], [0, 0, 0, 1, 1, 1], [0], [0]>} : vector<2x8x16xbf16>, vector<2x8x16xbf16>, vector<2x8x8xf32> -> vector<2x8x8xf32>
    %12 = tpu.iota {dimensions = array<i32: 0>} : vector<8x8xi32>
    %13 = tpu.iota {dimensions = array<i32: 1>} : vector<8x8xi32>
    %14 = arith.cmpi sle, %13, %12 : vector<8x8xi32>
    %15 = vector.shape_cast %14 : vector<8x8xi1> to vector<1x8x8xi1>
    %cst_5 = arith.constant 0xFF800000 : f32
    %16 = vector.shape_cast %15 : vector<1x8x8xi1> to vector<1x8x8xi1>
    %17 = vector.broadcast %16 : vector<1x8x8xi1> to vector<2x8x8xi1>
    %18 = vector.broadcast %cst_5 : f32 to vector<2x8x8xf32>
    %19 = arith.select %17, %11, %18 : vector<2x8x8xi1>, vector<2x8x8xf32>
    %cst_6 = arith.constant dense<0xFF800000> : vector<2x8xf32>
    %20 = vector.multi_reduction <maximumf>, %19, %cst_6 [2] : vector<2x8x8xf32> to vector<2x8xf32>
    %21 = vector.shape_cast %20 : vector<2x8xf32> to vector<2x8x1xf32>
    %22 = vector.broadcast %21 : vector<2x8x1xf32> to vector<2x8x8xf32>
    %23 = arith.subf %19, %22 : vector<2x8x8xf32>
    %24 = math.exp %23 : vector<2x8x8xf32>
    %cst_7 = arith.constant dense<0.000000e+00> : vector<2x8xf32>
    %25 = vector.multi_reduction <add>, %24, %cst_7 [2] : vector<2x8x8xf32> to vector<2x8xf32>
    %26 = vector.shape_cast %25 : vector<2x8xf32> to vector<2x8x1xf32>
    %27 = tpu.reciprocal %26 {approx = true} : vector<2x8x1xf32> -> vector<2x8x1xf32>
    %28 = vector.broadcast %27 : vector<2x8x1xf32> to vector<2x8x8xf32>
    %29 = arith.mulf %24, %28 : vector<2x8x8xf32>
    %30 = arith.truncf %29 : vector<2x8x8xf32> to vector<2x8x8xbf16>
    %31 = arith.truncf %8 : vector<2x8x16xf32> to vector<2x8x16xbf16>
    %cst_8 = arith.constant dense<0.000000e+00> : vector<2x8x16xf32>
    %32 = tpu.matmul %30, %31, %cst_8 {dimension_numbers = #tpu.dot_dimension_numbers<[2], [1], [1], [2], [0, 0, 0, 1, 1, 2], [0], [0]>} : vector<2x8x8xbf16>, vector<2x8x16xbf16>, vector<2x8x16xf32> -> vector<2x8x16xf32>
    %c0_9 = arith.constant 0 : index
    %c0_10 = arith.constant 0 : index
    %c0_11 = arith.constant 0 : index
    %33 = vector.load %arg3[%c0_9, %c0_10, %c0_11] : memref<2x8x16xf32, #tpu.memory_space<vmem>>, vector<2x8x16xf32>
    tpu.vector_store %arg3[%c0_9, %c0_10, %c0_11], %32 {strides = array<i32>} : memref<2x8x16xf32, #tpu.memory_space<vmem>>, vector<2x8x16xf32>,
    return
  }
  func.func @transform_0(%arg0: i32) -> (i32, i32, i32) {
    %c0_i32 = arith.constant 0 : i32
    %c0_i32_0 = arith.constant 0 : i32
    %c0_i32_1 = arith.constant 0 : i32
    return %arg0, %c0_i32, %c0_i32_0 : i32, i32, i32
  }
  func.func @transform_1(%arg0: i32) -> (i32, i32) {
    %c0_i32 = arith.constant 0 : i32
    %c0_i32_0 = arith.constant 0 : i32
    %c0_i32_1 = arith.constant 0 : i32
    return %c0_i32, %c0_i32_0 : i32, i32
  }
  func.func @transform_2(%arg0: i32) -> (i32, i32, i32) {
    %c0_i32 = arith.constant 0 : i32
    %c0_i32_0 = arith.constant 0 : i32
    %c0_i32_1 = arith.constant 0 : i32
    return %arg0, %c0_i32, %c0_i32_0 : i32, i32, i32
  }
}

</mosaic_0001>

<llo_original>
// kernel: tpu_custom_call.1
$region0: #{tpu_custom_call.1}
  #allocation0 [shape = 'u32[]', space=smem, size = 0x4, offset = 0x4, fixed_abs, tag = 'smem constant byte address 0x4 - core index']
  #allocation1 [shape = 'u32[144,128]{1,0:T(1,128)}', space=vmem, size = 0x12000, scoped, tag = 'internal scratch']
  %s0 = inlined_call_operand.hbm [shape: f32[2,8,32], index: 0, kind: input, shape index: {}]
  %s1 = inlined_call_operand.hbm [shape: bf16[32,48], index: 1, kind: input, shape index: {}]
  %s2 = inlined_call_operand.hbm [shape: f32[2,8,16], index: 2, kind: output, shape index: {}]
  %s3 = sld [smem:[#allocation0]]
  $region26: #{tpu_custom_call.1} parent=0
    _
  %s5 = ssub.s32 1, %s3
  %s6 = scalar_select 0, %s5, %s3
  $region1: #{tpu_custom_call.1} parent=0
    #allocation2 [shape = 'u8[8192]{0}', space=vmem, size = 0x2000, scoped, tag = 'input window, operand 0, single buffered']
    #allocation3 [shape = 's32[1]{0}', space=sflag, size = 0x4, scoped, tag = 'scoped memory for tpu_custom_call.1']
    #allocation4 [shape = 's32[1]{0}', space=sflag, size = 0x4, scoped, tag = 'scoped memory for tpu_custom_call.1']
    #allocation5 [shape = 'u8[8192]{0}', space=vmem, size = 0x2000, scoped, tag = 'input window, operand 1, single buffered']
    #allocation6 [shape = 's32[1]{0}', space=sflag, size = 0x4, scoped, tag = 'scoped memory for tpu_custom_call.1']
    #allocation7 [shape = 'u8[8192]{0}', space=vmem, size = 0x2000, scoped, tag = 'output window, operand 0, single buffered']
    %7 = vsyncpa [#allocation3], 0
    %8 = vsyncpa [#allocation6], 0
    %9 = vsyncpa [#allocation4], 0
    // Predicated region
    $region2: #{tpu_custom_call.1} parent=1 // pred_check
      _
    $region3: #{tpu_custom_call.1} parent=1 // pred_check_branch
      %11 = sbr.rel (0) target = $region5
    $region4: #{tpu_custom_call.1} parent=1 // pred_region
      %s13 = ssub.s32 256, 256
      %14 = vsyncadd [#allocation3], %s13
      %s15 = sshll.u32 [#allocation2], 4
      %s16 = int_to_ptr.vmem [resolvable:$true] %s15
      %21 = dma.hbm_to_vmem [thread:$0]  %s0, 256, %s16, [#allocation3], 128, 128, 8
    $region5: #{tpu_custom_call.1} parent=1 // pred_fallthru
      _
    // Predicated region
    $region6: #{tpu_custom_call.1} parent=1 // pred_check
      _
    $region7: #{tpu_custom_call.1} parent=1 // pred_check_branch
      %23 = sbr.rel (0) target = $region9
    $region8: #{tpu_custom_call.1} parent=1 // pred_region
      %s25 = ssub.s32 256, 256
      %26 = vsyncadd [#allocation6], %s25
      %s27 = sshll.u32 [#allocation5], 4
      %s28 = int_to_ptr.vmem [resolvable:$true] %s27
      %33 = dma.hbm_to_vmem [thread:$0]  %s1, 256, %s28, [#allocation6], 64, 64, 4
    $region9: #{tpu_custom_call.1} parent=1 // pred_fallthru
      _
    // Predicated region
    $region10: #{tpu_custom_call.1} parent=1 // pred_check
      _
    $region11: #{tpu_custom_call.1} parent=1 // pred_check_branch
      %35 = sbr.rel (0) target = $region13
    $region12: #{tpu_custom_call.1} parent=1 // pred_region
      %36 = dma.done [#allocation3], 256
    $region13: #{tpu_custom_call.1} parent=1 // pred_fallthru
      _
    // Predicated region
    $region14: #{tpu_custom_call.1} parent=1 // pred_check
      _
    $region15: #{tpu_custom_call.1} parent=1 // pred_check_branch
      %38 = sbr.rel (0) target = $region17
    $region16: #{tpu_custom_call.1} parent=1 // pred_region
      %39 = dma.done [#allocation6], 256
    $region17: #{tpu_custom_call.1} parent=1 // pred_fallthru
      _
    %v41 = vld [vmem:[#allocation2] sm:$0xff]
    %v42 = vld [vmem:[#allocation2 + $0x8] sm:$0xff]
    %v43 = vld [vmem:[#allocation5] sm:$0xf]
    %v44 = vld [vmem:[#allocation5 + $0x4] sm:$0xf]
    %v45 = vld [vmem:[#allocation5 + $0x8] sm:$0xf]
    %v46 = vld [vmem:[#allocation5 + $0xc] sm:$0xf]
    %v47 = vpack.c.bf16 %v42, %v41
    %v52 = vunpack.c.l.b16 %v43
    %v53 = vunpack.c.l.b16 %v44
    %v54 = vunpack.c.l.b16 %v45
    %v55 = vunpack.c.l.b16 %v46
    %v56 = vpack.c.b16 %v53, %v52
    %v57 = vpack.c.b16 %v55, %v54
    %vm60 = vcmask 261120
    %v62 = vsel %vm60, %v47, 0
    %64 = vmatprep.subr.bf16.mxu0 0
    %65 = vmatpush1.bf16.msra.mxu0 %v56
    %66 = vmatprep.subr.bf16.mxu0 0
    %67 = vmatpush1.bf16.msra.mxu0 %v57
    %68 = vmatprep.subr.bf16.mxu0 0
    %69 = vmatpush1.bf16.msra.mxu0 0
    %70 = vmatprep.subr.bf16.mxu0 0
    %71 = vmatpush1.bf16.msra.mxu0 0
    %72 = vmatprep.subr.bf16.mxu0 0
    %73 = vmatpush1.bf16.msra.mxu0 0
    %74 = vmatprep.subr.bf16.mxu0 0
    %75 = vmatpush1.bf16.msra.mxu0 0
    %76 = vmatprep.subr.bf16.mxu0 0
    %77 = vmatpush1.bf16.msra.mxu0 0
    %78 = vmatprep.subr.bf16.mxu0 0
    %79 = vmatpush1.bf16.msra.mxu0 0
    %80 = vmatprep.subr.bf16.mxu0 0
    %81 = vmatpush1.bf16.msra.mxu0 0
    %82 = vmatprep.subr.bf16.mxu0 0
    %83 = vmatpush1.bf16.msra.mxu0 0
    %84 = vmatprep.subr.bf16.mxu0 0
    %85 = vmatpush1.bf16.msra.mxu0 0
    %86 = vmatprep.subr.bf16.mxu0 0
    %87 = vmatpush1.bf16.msra.mxu0 0
    %88 = vmatprep.subr.bf16.mxu0 0
    %89 = vmatpush1.bf16.msra.mxu0 0
    %90 = vmatprep.subr.bf16.mxu0 0
    %91 = vmatpush1.bf16.msra.mxu0 0
    %92 = vmatprep.subr.bf16.mxu0 0
    %93 = vmatpush1.bf16.msra.mxu0 0
    %94 = vmatprep.subr.bf16.mxu0 0
    %95 = vmatpush1.bf16.msra.mxu0 0
    %96 = vmatprep.mubr.bf16.mxu0 0
    %97 = vmatmul.mubr.bf16.gmra.mrb[0].mxu0 %v62
    %v98 = vpop.f32.mrb[0].mxu0
    %v99 = vadd.f32 0.0, %v98
    %v100 = vpop.f32.mrb[0].mxu0
    %v101 = vpop.f32.mrb[0].mxu0
    %v102 = vadd.f32 0.0, %v101
    %v103 = vpop.f32.mrb[0].mxu0
    %104 = vdwg.mxu0
    %v105 = vpack.c.bf16 %v99, %v99
    %v106 = vpack.c.bf16 %v102, %v102
    %108 = vrot.lane.b32.xlu0 %v105, 112
    %v109 = vpop.permute.xlu0 %108
    %vm110 = vcmask 130048
    %v112 = vsel %vm110, %v109, 0
    %v115 = vsel %vm110, %v105, 0
    %117 = vmatprep.subr.bf16.mxu0 0
    %118 = vmatpush1.bf16.xpose.msra.mxu0 %v115
    %119 = vmatprep.subr.bf16.mxu0 0
    %120 = vmatpush1.bf16.xpose.msra.mxu0 0
    %121 = vmatprep.subr.bf16.mxu0 0
    %122 = vmatpush1.bf16.xpose.msra.mxu0 0
    %123 = vmatprep.subr.bf16.mxu0 0
    %124 = vmatpush1.bf16.xpose.msra.mxu0 0
    %125 = vmatprep.subr.bf16.mxu0 0
    %126 = vmatpush1.bf16.xpose.msra.mxu0 0
    %127 = vmatprep.subr.bf16.mxu0 0
    %128 = vmatpush1.bf16.xpose.msra.mxu0 0
    %129 = vmatprep.subr.bf16.mxu0 0
    %130 = vmatpush1.bf16.xpose.msra.mxu0 0
    %131 = vmatprep.subr.bf16.mxu0 0
    %132 = vmatpush1.bf16.xpose.msra.mxu0 0
    %133 = vmatprep.subr.bf16.mxu0 0
    %134 = vmatpush1.bf16.xpose.msra.mxu0 0
    %135 = vmatprep.subr.bf16.mxu0 0
    %136 = vmatpush1.bf16.xpose.msra.mxu0 0
    %137 = vmatprep.subr.bf16.mxu0 0
    %138 = vmatpush1.bf16.xpose.msra.mxu0 0
    %139 = vmatprep.subr.bf16.mxu0 0
    %140 = vmatpush1.bf16.xpose.msra.mxu0 0
    %141 = vmatprep.subr.bf16.mxu0 0
    %142 = vmatpush1.bf16.xpose.msra.mxu0 0
    %143 = vmatprep.subr.bf16.mxu0 0
    %144 = vmatpush1.bf16.xpose.msra.mxu0 0
    %145 = vmatprep.subr.bf16.mxu0 0
    %146 = vmatpush1.bf16.xpose.msra.mxu0 0
    %147 = vmatprep.subr.bf16.mxu0 0
    %148 = vmatpush1.bf16.xpose.msra.mxu0 0
    %149 = vmatprep.mubr.bf16.mxu0 0
    %150 = vmatmul.mubr.bf16.gmra.mrb[0].mxu0 %v112
    %v151 = vpop.f32.mrb[0].mxu0
    %v152 = vadd.f32 0.0, %v151
    %v153 = vpop.f32.mrb[0].mxu0
    %v154 = vpop.f32.mrb[0].mxu0
    %v155 = vpop.f32.mrb[0].mxu0
    %156 = vdwg.mxu0
    %158 = vrot.lane.b32.xlu0 %v106, 112
    %v159 = vpop.permute.xlu0 %158
    %v161 = vsel %vm110, %v159, 0
    %v164 = vsel %vm110, %v106, 0
    %166 = vmatprep.subr.bf16.mxu0 0
    %167 = vmatpush1.bf16.xpose.msra.mxu0 %v164
    %168 = vmatprep.subr.bf16.mxu0 0
    %169 = vmatpush1.bf16.xpose.msra.mxu0 0
    %170 = vmatprep.subr.bf16.mxu0 0
    %171 = vmatpush1.bf16.xpose.msra.mxu0 0
    %172 = vmatprep.subr.bf16.mxu0 0
    %173 = vmatpush1.bf16.xpose.msra.mxu0 0
    %174 = vmatprep.subr.bf16.mxu0 0
    %175 = vmatpush1.bf16.xpose.msra.mxu0 0
    %176 = vmatprep.subr.bf16.mxu0 0
    %177 = vmatpush1.bf16.xpose.msra.mxu0 0
    %178 = vmatprep.subr.bf16.mxu0 0
    %179 = vmatpush1.bf16.xpose.msra.mxu0 0
    %180 = vmatprep.subr.bf16.mxu0 0
    %181 = vmatpush1.bf16.xpose.msra.mxu0 0
    %182 = vmatprep.subr.bf16.mxu0 0
    %183 = vmatpush1.bf16.xpose.msra.mxu0 0
    %184 = vmatprep.subr.bf16.mxu0 0
    %185 = vmatpush1.bf16.xpose.msra.mxu0 0
    %186 = vmatprep.subr.bf16.mxu0 0
    %187 = vmatpush1.bf16.xpose.msra.mxu0 0
    %188 = vmatprep.subr.bf16.mxu0 0
    %189 = vmatpush1.bf16.xpose.msra.mxu0 0
    %190 = vmatprep.subr.bf16.mxu0 0
    %191 = vmatpush1.bf16.xpose.msra.mxu0 0
    %192 = vmatprep.subr.bf16.mxu0 0
    %193 = vmatpush1.bf16.xpose.msra.mxu0 0
    %194 = vmatprep.subr.bf16.mxu0 0
    %195 = vmatpush1.bf16.xpose.msra.mxu0 0
    %196 = vmatprep.subr.bf16.mxu0 0
    %197 = vmatpush1.bf16.xpose.msra.mxu0 0
    %198 = vmatprep.mubr.bf16.mxu0 0
    %199 = vmatmul.mubr.bf16.gmra.mrb[0].mxu0 %v161
    %v200 = vpop.f32.mrb[0].mxu0
    %v201 = vadd.f32 0.0, %v200
    %v202 = vpop.f32.mrb[0].mxu0
    %v203 = vpop.f32.mrb[0].mxu0
    %v204 = vpop.f32.mrb[0].mxu0
    %205 = vdwg.mxu0
    %v206 = vlaneseq
    %v207 = vshrl.u32 %v206, 7
    %v208 = vlaneseq
    %v209 = vand.u32 %v208, 127
    %vm210 = vcmp.le.s32.totalorder %v209, %v207
    %v211 = vsel %vm210, 1, 0
    %vm212 = vcmp.eq.s32.totalorder %v211, 1
    %v213 = vsel %vm212, %v152, -inf
    %v214 = vsel %vm212, %v201, -inf
    %vm215 = vcmask 64512
    %v216 = vsel %vm215, %v213, -inf
    %217 = vmax.xlane.f32.xlu0 %v216
    %v218 = vpop.xlane.xlu0 %217
    %v219 = vsel %vm215, %v214, -inf
    %220 = vmax.xlane.f32.xlu0 %v219
    %v221 = vpop.xlane.xlu0 %220
    %v222 = vsub.f32 %v213, %v218
    %v223 = vsub.f32 %v214, %v221
    %v224 = vmul.f32 %v222, 1.442695
    %v225 = vpow.pop %v224
    %v226 = vmul.f32 %v223, 1.442695
    %v227 = vpow.pop %v226
    %v228 = vsel %vm215, %v225, 0.0
    %229 = vadd.xlane.f32.xlu0 %v228
    %v230 = vpop.xlane.xlu0 %229
    %v231 = vsel %vm215, %v227, 0.0
    %232 = vadd.xlane.f32.xlu0 %v231
    %v233 = vpop.xlane.xlu0 %232
    %v234 = vrcp.pop %v230
    %v235 = vrcp.pop %v233
    %v236 = vmul.f32 %v225, %v234
    %v237 = vmul.f32 %v227, %v235
    %v238 = vpack.c.bf16 %v236, %v236
    %v239 = vpack.c.bf16 %v237, %v237
    %240 = vrot.lane.b32.xlu0 %v105, 96
    %v241 = vpop.permute.xlu0 %240
    %v243 = vsel %vm215, %v238, 0
    %vm245 = vcmask 1043456
    %v247 = vsel %vm245, %v241, 0
    %249 = vmatprep.subr.bf16.mxu0 0
    %250 = vmatpush1.bf16.msra.mxu0 %v247
    %251 = vmatprep.subr.bf16.mxu0 0
    %252 = vmatpush1.bf16.msra.mxu0 0
    %253 = vmatprep.subr.bf16.mxu0 0
    %254 = vmatpush1.bf16.msra.mxu0 0
    %255 = vmatprep.subr.bf16.mxu0 0
    %256 = vmatpush1.bf16.msra.mxu0 0
    %257 = vmatprep.subr.bf16.mxu0 0
    %258 = vmatpush1.bf16.msra.mxu0 0
    %259 = vmatprep.subr.bf16.mxu0 0
    %260 = vmatpush1.bf16.msra.mxu0 0
    %261 = vmatprep.subr.bf16.mxu0 0
    %262 = vmatpush1.bf16.msra.mxu0 0
    %263 = vmatprep.subr.bf16.mxu0 0
    %264 = vmatpush1.bf16.msra.mxu0 0
    %265 = vmatprep.subr.bf16.mxu0 0
    %266 = vmatpush1.bf16.msra.mxu0 0
    %267 = vmatprep.subr.bf16.mxu0 0
    %268 = vmatpush1.bf16.msra.mxu0 0
    %269 = vmatprep.subr.bf16.mxu0 0
    %270 = vmatpush1.bf16.msra.mxu0 0
    %271 = vmatprep.subr.bf16.mxu0 0
    %272 = vmatpush1.bf16.msra.mxu0 0
    %273 = vmatprep.subr.bf16.mxu0 0
    %274 = vmatpush1.bf16.msra.mxu0 0
    %275 = vmatprep.subr.bf16.mxu0 0
    %276 = vmatpush1.bf16.msra.mxu0 0
    %277 = vmatprep.subr.bf16.mxu0 0
    %278 = vmatpush1.bf16.msra.mxu0 0
    %279 = vmatprep.subr.bf16.mxu0 0
    %280 = vmatpush1.bf16.msra.mxu0 0
    %281 = vmatprep.mubr.bf16.mxu0 0
    %282 = vmatmul.mubr.bf16.gmra.mrb[0].mxu0 %v243
    %v283 = vpop.f32.mrb[0].mxu0
    %v284 = vadd.f32 0.0, %v283
    %v285 = vpop.f32.mrb[0].mxu0
    %v286 = vpop.f32.mrb[0].mxu0
    %v287 = vpop.f32.mrb[0].mxu0
    %288 = vdwg.mxu0
    %289 = vrot.lane.b32.xlu0 %v106, 96
    %v290 = vpop.permute.xlu0 %289
    %v292 = vsel %vm215, %v239, 0
    %v295 = vsel %vm245, %v290, 0
    %297 = vmatprep.subr.bf16.mxu0 0
    %298 = vmatpush1.bf16.msra.mxu0 %v295
    %299 = vmatprep.subr.bf16.mxu0 0
    %300 = vmatpush1.bf16.msra.mxu0 0
    %301 = vmatprep.subr.bf16.mxu0 0
    %302 = vmatpush1.bf16.msra.mxu0 0
    %303 = vmatprep.subr.bf16.mxu0 0
    %304 = vmatpush1.bf16.msra.mxu0 0
    %305 = vmatprep.subr.bf16.mxu0 0
    %306 = vmatpush1.bf16.msra.mxu0 0
    %307 = vmatprep.subr.bf16.mxu0 0
    %308 = vmatpush1.bf16.msra.mxu0 0
    %309 = vmatprep.subr.bf16.mxu0 0
    %310 = vmatpush1.bf16.msra.mxu0 0
    %311 = vmatprep.subr.bf16.mxu0 0
    %312 = vmatpush1.bf16.msra.mxu0 0
    %313 = vmatprep.subr.bf16.mxu0 0
    %314 = vmatpush1.bf16.msra.mxu0 0
    %315 = vmatprep.subr.bf16.mxu0 0
    %316 = vmatpush1.bf16.msra.mxu0 0
    %317 = vmatprep.subr.bf16.mxu0 0
    %318 = vmatpush1.bf16.msra.mxu0 0
    %319 = vmatprep.subr.bf16.mxu0 0
    %320 = vmatpush1.bf16.msra.mxu0 0
    %321 = vmatprep.subr.bf16.mxu0 0
    %322 = vmatpush1.bf16.msra.mxu0 0
    %323 = vmatprep.subr.bf16.mxu0 0
    %324 = vmatpush1.bf16.msra.mxu0 0
    %325 = vmatprep.subr.bf16.mxu0 0
    %326 = vmatpush1.bf16.msra.mxu0 0
    %327 = vmatprep.subr.bf16.mxu0 0
    %328 = vmatpush1.bf16.msra.mxu0 0
    %329 = vmatprep.mubr.bf16.mxu0 0
    %330 = vmatmul.mubr.bf16.gmra.mrb[0].mxu0 %v292
    %v331 = vpop.f32.mrb[0].mxu0
    %v332 = vadd.f32 0.0, %v331
    %v333 = vpop.f32.mrb[0].mxu0
    %v334 = vpop.f32.mrb[0].mxu0
    %v335 = vpop.f32.mrb[0].mxu0
    %336 = vdwg.mxu0
    %337 = vst.msk [vmem:[#allocation7] sm:$0xff] %vm110, %v284
    %338 = vst.msk [vmem:[#allocation7 + $0x8] sm:$0xff] %vm110, %v332
    // Predicated region
    $region18: #{tpu_custom_call.1} parent=1 // pred_check
      _
    $region19: #{tpu_custom_call.1} parent=1 // pred_check_branch
      %340 = sbr.rel (0) target = $region21
    $region20: #{tpu_custom_call.1} parent=1 // pred_region
      %s342 = ssub.s32 256, 256
      %343 = vsyncadd [#allocation4], %s342
      %s344 = sshll.u32 [#allocation7], 4
      %s345 = int_to_ptr.vmem [resolvable:$true] %s344
      %350 = dma.vmem_to_hbm [thread:$0]  %s345, 256, %s2, [#allocation4], 128, 128, 8
    $region21: #{tpu_custom_call.1} parent=1 // pred_fallthru
      _
    // Predicated region
    $region22: #{tpu_custom_call.1} parent=1 // pred_check
      _
    $region23: #{tpu_custom_call.1} parent=1 // pred_check_branch
      %352 = sbr.rel (0) target = $region25
    $region24: #{tpu_custom_call.1} parent=1 // pred_region
      %353 = dma.done [#allocation4], 256
    $region25: #{tpu_custom_call.1} parent=1 // pred_fallthru
      _
    %354 = vsyncpa [#allocation3], 1
    %355 = vsyncpa [#allocation6], 1
    %356 = vsyncpa [#allocation4], 1

</llo_original>
